<compile_context>
chip_gen: v7x
topology: tpu7x:2x2x1
jax: 0.10.0
libtpu: 0.0.40
codegen_flags: <defaults>
</compile_context>

<pallas_src>
import math
from functools import partial

import jax
import jax.numpy as jnp
from jax import lax
from jax.experimental import pallas as pl
from jax.experimental.pallas import tpu as pltpu


def _upsample_conv_kernel(x_ref, w_ref, b_ref, even_ref, odd_ref):
    """Fused nearest-2x-upsample + Conv1d(k=3, pad=1), polyphase form.

    x_ref   : (Cin, T)      T = nb * L_pad, length/batch flattened on lanes.
                            Each L_pad segment ends in >=1 zero column.
    w_ref   : (4, Cout, Cin) tap sums: [W0, W1+W2, W0+W1, W2]
    b_ref   : (Cout, 1)
    even_ref: (Cout, T)     out[2j]   columns
    odd_ref : (Cout, T)     out[2j+1] columns
    """
    x = x_ref[...]
    t = x_ref.shape[-1]
    # Lane shifts on the XLU. The zero pad column at the end of every batch
    # segment makes the wrap-around column correct for x_prev and harmless
    # (sliced off) for x_next -> no boundary masks needed.
    x_prev = pltpu.roll(x, 1, axis=1)       # x_prev[:, j] = x[:, j-1]
    x_next = pltpu.roll(x, t - 1, axis=1)   # x_next[:, j] = x[:, j+1]

    b = b_ref[...]
    even = jnp.dot(w_ref[1], x, preferred_element_type=jnp.float32)
    even = even + jnp.dot(w_ref[0], x_prev, preferred_element_type=jnp.float32)
    odd = jnp.dot(w_ref[2], x, preferred_element_type=jnp.float32)
    odd = odd + jnp.dot(w_ref[3], x_next, preferred_element_type=jnp.float32)

    even_ref[...] = (even + b).astype(even_ref.dtype)
    odd_ref[...] = (odd + b).astype(odd_ref.dtype)


def _vmem_limit_bytes():
    """Generation-aware scoped-VMEM limit (v5e/v6e: 128 MiB, v7x: 64 MiB phys)."""
    try:
        cap = int(pltpu.get_tpu_info().vmem_capacity_bytes)
    except Exception:
        cap = 64 << 20  # conservative fallback (v7x physical)
    return int(min(int(0.75 * cap), 100 << 20))


def _pick_batch_block(n, cin, cout, l_pad, vmem_limit):
    """Batch elements per grid step.

    Sized from the scoped-VMEM limit (not the v5e 16 MiB default), counting
    double-buffered in/out blocks AND the resident weight/bias block, with a
    cap so the grid keeps >= 2 parallel steps for v7x's two TensorCores.
    """
    per_elem = 2 * (cin + 2 * cout) * l_pad * 4        # dbl-buffered x + even + odd
    resident = 2 * (4 * cout * cin + cout) * 4          # weights + bias (dbl-buffered)
    budget = max(vmem_limit - resident - (4 << 20), per_elem)
    nb = int(max(1, min(n, budget // per_elem)))
    if n >= 2:
        nb = min(nb, n // 2)                             # >= 2 grid steps (megacore)
    nb = max(nb, 1)
    while n % nb:
        nb -= 1
    return nb


@partial(jax.jit, static_argnames=("use_conv", "padding"))
def upsample_forward(x, weight=None, bias=None, *, use_conv=True, padding=1):
    """Forward pass of `Upsample` (nearest 2x along L + optional Conv1d(3, pad=1)).

    x      : (N, C, L) float32, PyTorch NCL layout
    weight : (Cout, Cin, 3) float32 (PyTorch Conv1d layout), if use_conv
    bias   : (Cout,) float32, if use_conv
    returns: (N, Cout, 2L) float32  (== (N, C, 2L) when use_conv=False)
    """
    assert padding == 1  # TODO(synk): only padding=1 (the module default) implemented.
    n, c, l = x.shape

    if not use_conv:
        # Pure nearest repeat: a bandwidth-only strided copy, left to XLA.
        return jnp.repeat(x, 2, axis=2)

    assert weight.shape[1] == c and weight.shape[2] == 3
    cout = weight.shape[0]

    # Pad L to a lane-aligned multiple of 128 that is STRICTLY greater than L,
    # then flatten to channel-major (Cin, N*L_pad). The trailing zero columns
    # provide the conv's zero padding and absorb roll wrap-around.
    l_pad = (l // 128 + 1) * 128
    xp = jnp.pad(x.astype(jnp.float32), ((0, 0), (0, 0), (0, l_pad - l)))
    x2 = jnp.transpose(xp, (1, 0, 2)).reshape(c, n * l_pad)

    # Polyphase tap sums: out_even = W0@x_prev + (W1+W2)@x,
    #                     out_odd  = (W0+W1)@x + W2@x_next.
    w = weight.astype(jnp.float32)
    w0, w1, w2 = w[:, :, 0], w[:, :, 1], w[:, :, 2]
    w_taps = jnp.stack([w0, w1 + w2, w0 + w1, w2], axis=0)   # (4, Cout, Cin)
    b = bias.reshape(cout, 1).astype(jnp.float32)

    vmem_limit = _vmem_limit_bytes()
    nb = _pick_batch_block(n, c, cout, l_pad, vmem_limit)
    tcols = nb * l_pad

    even, odd = pl.pallas_call(
        _upsample_conv_kernel,
        out_shape=(jax.ShapeDtypeStruct((cout, n * l_pad), jnp.float32),
                   jax.ShapeDtypeStruct((cout, n * l_pad), jnp.float32)),
        grid_spec=pltpu.PrefetchScalarGridSpec(
            num_scalar_prefetch=0,
            grid=(n // nb,),
            in_specs=[
                pl.BlockSpec((c, tcols), lambda g: (0, g)),
                pl.BlockSpec((4, cout, c), lambda g: (0, 0, 0)),   # resident
                pl.BlockSpec((cout, 1), lambda g: (0, 0)),         # resident
            ],
            out_specs=[
                pl.BlockSpec((cout, tcols), lambda g: (0, g)),
                pl.BlockSpec((cout, tcols), lambda g: (0, g)),
            ],
        ),
        compiler_params=pltpu.CompilerParams(
            dimension_semantics=("parallel",),
            vmem_limit_bytes=vmem_limit,
        ),
    )(x2, w_taps, b)

    # Interleave even/odd phases and drop the pad columns (fused by XLA under jit).
    even = even.reshape(cout, n, l_pad)[:, :, :l]
    odd = odd.reshape(cout, n, l_pad)[:, :, :l]
    y = jnp.stack([even, odd], axis=-1).reshape(cout, n, 2 * l)
    return jnp.transpose(y, (1, 0, 2)).astype(x.dtype)


def _reference(x, weight, bias, use_conv):
    """Pure-JAX reference matching F.interpolate(nearest, 2x) + nn.Conv1d."""
    xu = jnp.repeat(x, 2, axis=-1)
    if not use_conv:
        return xu
    out = lax.conv_general_dilated(
        xu, weight, window_strides=(1,), padding=[(1, 1)],
        dimension_numbers=("NCH", "OIH", "NCH"))
    return out + bias[None, :, None]


if __name__ == "__main__":
    key = jax.random.PRNGKey(0)
    k_x, k_w, k_b = jax.random.split(key, 3)

    # Small shapes consistent with the module: batch=2, channels=4, length=16.
    N, C, L = 2, 4, 16
    out_channels = 8

    x = jax.random.normal(k_x, (N, C, L), jnp.float32)

    # Deterministic Conv1d-style init: U(-k, k) with k = 1/sqrt(Cin * kernel).
    bound = 1.0 / math.sqrt(C * 3)
    weight = jax.random.uniform(k_w, (out_channels, C, 3), jnp.float32,
                                -bound, bound)
    bias = jax.random.uniform(k_b, (out_channels,), jnp.float32, -bound, bound)

    # use_conv=True path (fused upsample + conv Pallas kernel)
    y = jax.block_until_ready(upsample_forward(x, weight, bias, use_conv=True))
    y_ref = _reference(x, weight, bias, True)
    assert y.shape == (N, out_channels, 2 * L), y.shape
    assert jnp.allclose(y, y_ref, atol=1e-5, rtol=1e-5), "conv path mismatch"

    # use_conv=False path (pure nearest upsample, bandwidth-only)
    y2 = jax.block_until_ready(upsample_forward(x, use_conv=False))
    assert y2.shape == (N, C, 2 * L), y2.shape
    assert jnp.allclose(y2, _reference(x, None, None, False),
                        atol=1e-6, rtol=1e-6), "upsample path mismatch"

    print("KERNEL_OK")
</pallas_src>

<mosaic_0001>
module attributes {stable_mosaic.version = 11 : i64} {
  func.func @_upsample_conv_kernel(%arg0: i32, %arg1: memref<4x128xf32, #tpu.memory_space<vmem>>, %arg2: memref<4x8x4xf32, #tpu.memory_space<vmem>>, %arg3: memref<8x1xf32, #tpu.memory_space<vmem>>, %arg4: memref<8x128xf32, #tpu.memory_space<vmem>>, %arg5: memref<8x128xf32, #tpu.memory_space<vmem>>) attributes {dimension_semantics = [#tpu.dimension_semantics<parallel>], iteration_bounds = array<i64: 2>, scalar_prefetch = 0 : i64, scratch_operands = 0 : i64, tpu.core_type = #tpu.core_type<tc>, window_params = [{transform_indices = @transform_0, window_bounds = array<i64: 4, 128>}, {pipeline_mode = #tpu.pipeline_mode<synchronous>, transform_indices = @transform_1, window_bounds = array<i64: 4, 8, 4>}, {pipeline_mode = #tpu.pipeline_mode<synchronous>, transform_indices = @transform_2, window_bounds = array<i64: 8, 1>}, {transform_indices = @transform_3, window_bounds = array<i64: 8, 128>}, {transform_indices = @transform_4, window_bounds = array<i64: 8, 128>}]} {
    %c0 = arith.constant 0 : index
    %c0_0 = arith.constant 0 : index
    %0 = vector.load %arg1[%c0, %c0_0] : memref<4x128xf32, #tpu.memory_space<vmem>>, vector<4x128xf32>
    %c1_i32 = arith.constant 1 : i32
    %1 = tpu.dynamic_rotate %0 by %c1_i32 dim 1 : vector<4x128xf32>, i32 -> vector<4x128xf32>
    %c127_i32 = arith.constant 127 : i32
    %2 = tpu.dynamic_rotate %0 by %c127_i32 dim 1 : vector<4x128xf32>, i32 -> vector<4x128xf32>
    %c0_1 = arith.constant 0 : index
    %c0_2 = arith.constant 0 : index
    %3 = vector.load %arg3[%c0_1, %c0_2] : memref<8x1xf32, #tpu.memory_space<vmem>>, vector<8x1xf32>
    %c1 = arith.constant 1 : index
    %c0_3 = arith.constant 0 : index
    %c0_4 = arith.constant 0 : index
    %4 = vector.load %arg2[%c1, %c0_3, %c0_4] : memref<4x8x4xf32, #tpu.memory_space<vmem>>, vector<1x8x4xf32>
    %5 = vector.shape_cast %4 : vector<1x8x4xf32> to vector<8x4xf32>
    %cst = arith.constant dense<0.000000e+00> : vector<8x128xf32>
    %6 = tpu.matmul %5, %0, %cst {dimension_numbers = #tpu.dot_dimension_numbers<[1], [0], [0], [1], [0, 0, 1, 1], [], []>} : vector<8x4xf32>, vector<4x128xf32>, vector<8x128xf32> -> vector<8x128xf32>
    %c0_5 = arith.constant 0 : index
    %c0_6 = arith.constant 0 : index
    %c0_7 = arith.constant 0 : index
    %7 = vector.load %arg2[%c0_5, %c0_6, %c0_7] : memref<4x8x4xf32, #tpu.memory_space<vmem>>, vector<1x8x4xf32>
    %8 = vector.shape_cast %7 : vector<1x8x4xf32> to vector<8x4xf32>
    %cst_8 = arith.constant dense<0.000000e+00> : vector<8x128xf32>
    %9 = tpu.matmul %8, %1, %cst_8 {dimension_numbers = #tpu.dot_dimension_numbers<[1], [0], [0], [1], [0, 0, 1, 1], [], []>} : vector<8x4xf32>, vector<4x128xf32>, vector<8x128xf32> -> vector<8x128xf32>
    %10 = arith.addf %6, %9 : vector<8x128xf32>
    %c2 = arith.constant 2 : index
    %c0_9 = arith.constant 0 : index
    %c0_10 = arith.constant 0 : index
    %11 = vector.load %arg2[%c2, %c0_9, %c0_10] : memref<4x8x4xf32, #tpu.memory_space<vmem>>, vector<1x8x4xf32>
    %12 = vector.shape_cast %11 : vector<1x8x4xf32> to vector<8x4xf32>
    %cst_11 = arith.constant dense<0.000000e+00> : vector<8x128xf32>
    %13 = tpu.matmul %12, %0, %cst_11 {dimension_numbers = #tpu.dot_dimension_numbers<[1], [0], [0], [1], [0, 0, 1, 1], [], []>} : vector<8x4xf32>, vector<4x128xf32>, vector<8x128xf32> -> vector<8x128xf32>
    %c3 = arith.constant 3 : index
    %c0_12 = arith.constant 0 : index
    %c0_13 = arith.constant 0 : index
    %14 = vector.load %arg2[%c3, %c0_12, %c0_13] : memref<4x8x4xf32, #tpu.memory_space<vmem>>, vector<1x8x4xf32>
    %15 = vector.shape_cast %14 : vector<1x8x4xf32> to vector<8x4xf32>
    %cst_14 = arith.constant dense<0.000000e+00> : vector<8x128xf32>
    %16 = tpu.matmul %15, %2, %cst_14 {dimension_numbers = #tpu.dot_dimension_numbers<[1], [0], [0], [1], [0, 0, 1, 1], [], []>} : vector<8x4xf32>, vector<4x128xf32>, vector<8x128xf32> -> vector<8x128xf32>
    %17 = arith.addf %13, %16 : vector<8x128xf32>
    %18 = vector.broadcast %3 : vector<8x1xf32> to vector<8x128xf32>
    %19 = arith.addf %10, %18 : vector<8x128xf32>
    %c0_15 = arith.constant 0 : index
    %c0_16 = arith.constant 0 : index
    %20 = vector.load %arg4[%c0_15, %c0_16] : memref<8x128xf32, #tpu.memory_space<vmem>>, vector<8x128xf32>
    tpu.vector_store %arg4[%c0_15, %c0_16], %19 {strides = array<i32>} : memref<8x128xf32, #tpu.memory_space<vmem>>, vector<8x128xf32>,
    %21 = vector.broadcast %3 : vector<8x1xf32> to vector<8x128xf32>
    %22 = arith.addf %17, %21 : vector<8x128xf32>
    %c0_17 = arith.constant 0 : index
    %c0_18 = arith.constant 0 : index
    %23 = vector.load %arg5[%c0_17, %c0_18] : memref<8x128xf32, #tpu.memory_space<vmem>>, vector<8x128xf32>
    tpu.vector_store %arg5[%c0_17, %c0_18], %22 {strides = array<i32>} : memref<8x128xf32, #tpu.memory_space<vmem>>, vector<8x128xf32>,
    return
  }
  func.func @transform_0(%arg0: i32) -> (i32, i32) {
    %c0_i32 = arith.constant 0 : i32
    %c0_i32_0 = arith.constant 0 : i32
    return %c0_i32, %arg0 : i32, i32
  }
  func.func @transform_1(%arg0: i32) -> (i32, i32, i32) {
    %c0_i32 = arith.constant 0 : i32
    %c0_i32_0 = arith.constant 0 : i32
    %c0_i32_1 = arith.constant 0 : i32
    %c0_i32_2 = arith.constant 0 : i32
    return %c0_i32, %c0_i32_0, %c0_i32_1 : i32, i32, i32
  }
  func.func @transform_2(%arg0: i32) -> (i32, i32) {
    %c0_i32 = arith.constant 0 : i32
    %c0_i32_0 = arith.constant 0 : i32
    %c0_i32_1 = arith.constant 0 : i32
    return %c0_i32, %c0_i32_0 : i32, i32
  }
  func.func @transform_3(%arg0: i32) -> (i32, i32) {
    %c0_i32 = arith.constant 0 : i32
    %c0_i32_0 = arith.constant 0 : i32
    return %c0_i32, %arg0 : i32, i32
  }
  func.func @transform_4(%arg0: i32) -> (i32, i32) {
    %c0_i32 = arith.constant 0 : i32
    %c0_i32_0 = arith.constant 0 : i32
    return %c0_i32, %arg0 : i32, i32
  }
}

</mosaic_0001>

<llo_original>
// kernel: upsample_forward.1
$region0: #{upsample_forward.1}
  #allocation0 [shape = 'u32[]', space=smem, size = 0x4, offset = 0x4, fixed_abs, tag = 'smem constant byte address 0x4 - core index']
  #allocation1 [shape = 'u32[144,128]{1,0:T(1,128)}', space=vmem, size = 0x12000, scoped, tag = 'internal scratch']
  %s0 = inlined_call_operand.vmem [shape: f32[4,256], index: 0, kind: input, shape index: {}]
  %s1 = inlined_call_operand.vmem [shape: f32[4,8,4], index: 1, kind: input, shape index: {}]
  %s2 = inlined_call_operand.vmem [shape: f32[8,1], index: 2, kind: input, shape index: {}]
  %s3 = inlined_call_operand.vmem [shape: f32[8,256], index: 3, kind: output, shape index: {0}]
  %s4 = inlined_call_operand.vmem [shape: f32[8,256], index: 4, kind: output, shape index: {1}]
  %5 = xla_tuple %s3, %s4
  %s6 = sld [smem:[#allocation0]]
  $region53: #{upsample_forward.1} parent=0
    _
  %s8 = ssub.s32 1, %s6
  %s9 = scalar_select 0, %s8, %s6
  loop: start=0, step=1, limit=4
  $region2: #{upsample_forward.1} parent=0 // loop_pre_header
    _
  $region3: #{upsample_forward.1} parent=0 // loop_header
    %s11 = sphi 0, %s15
    %p12 = scmp.ge.s32.totalorder %s11, 4
    %s21 = sphi 0, %s23
    %s24 = sphi 0, %s21
    %s25 = sphi 0, %s24
    %s41 = sphi 0, %s25
    %s45 = sphi 0, %s45
    %s47 = sphi 0, %s45
    %s48 = sphi 0, %s47
    %s62 = sphi 0, %s48
    %s66 = sphi 0, %s66
    %s68 = sphi 0, %s66
    %s69 = sphi 0, %s68
    %s83 = sphi 0, %s69
    %s89 = sphi 0, %s91
    %s92 = sphi 0, %s89
    %s93 = sphi 0, %s92
    %s109 = sphi 0, %s93
    %s115 = sphi 0, %s117
    %s118 = sphi 0, %s115
    %s119 = sphi 0, %s118
    %s135 = sphi 0, %s119
  $region4: #{upsample_forward.1} parent=0 // loop_header_branch
    %14 = sbr.rel (%p12) target = $region8
  $region5: #{upsample_forward.1} parent=0 // loop_body
    %s16 = ssub.s32 %s11, 1
    %s17 = ssub.s32 %s11, 2
    %s18 = sadd.s32 %s11, 1
    %s19 = ssub.s32 %s11, %s18
    %p20 = scmp.eq.s32.totalorder %s19, 0
    %s22 = sadd.s32 %s21, 1
    %s23 = scalar_select %p20, %s21, %s22
    %p26 = pneg %p20
    %p27 = scmp.eq.s32.totalorder %s11, 1
    %p28 = por %p26, %p27
    %p29 = scmp.ne.s32.totalorder %s21, %s24
    %p30 = scmp.eq.s32.totalorder %s11, 0
    %p31 = por %p29, %p30
    %p32 = scmp.ne.s32.totalorder %s21, %s24
    %p33 = scmp.eq.s32.totalorder %s16, 1
    %p34 = por %p32, %p33
    %p35 = scmp.ne.s32.totalorder %s24, %s25
    %p36 = scmp.eq.s32.totalorder %s16, 0
    %p37 = por %p35, %p36
    %p38 = scmp.ne.s32.totalorder %s24, %s25
    %p39 = scmp.eq.s32.totalorder %s17, 1
    %p40 = por %p38, %p39
    %p42 = scmp.ne.s32.totalorder %s25, %s41
    %p43 = scmp.eq.s32.totalorder %s17, 0
    %p44 = por %p42, %p43
    %s46 = sadd.s32 %s45, 1
    %p49 = scmp.eq.s32.totalorder %s11, 1
    %p50 = scmp.ne.s32.totalorder %s45, %s47
    %p51 = scmp.eq.s32.totalorder %s11, 0
    %p52 = por %p50, %p51
    %p53 = scmp.ne.s32.totalorder %s45, %s47
    %p54 = scmp.eq.s32.totalorder %s16, 1
    %p55 = por %p53, %p54
    %p56 = scmp.ne.s32.totalorder %s47, %s48
    %p57 = scmp.eq.s32.totalorder %s16, 0
    %p58 = por %p56, %p57
    %p59 = scmp.ne.s32.totalorder %s47, %s48
    %p60 = scmp.eq.s32.totalorder %s17, 1
    %p61 = por %p59, %p60
    %p63 = scmp.ne.s32.totalorder %s48, %s62
    %p64 = scmp.eq.s32.totalorder %s17, 0
    %p65 = por %p63, %p64
    %s67 = sadd.s32 %s66, 1
    %p70 = scmp.eq.s32.totalorder %s11, 1
    %p71 = scmp.ne.s32.totalorder %s66, %s68
    %p72 = scmp.eq.s32.totalorder %s11, 0
    %p73 = por %p71, %p72
    %p74 = scmp.ne.s32.totalorder %s66, %s68
    %p75 = scmp.eq.s32.totalorder %s16, 1
    %p76 = por %p74, %p75
    %p77 = scmp.ne.s32.totalorder %s68, %s69
    %p78 = scmp.eq.s32.totalorder %s16, 0
    %p79 = por %p77, %p78
    %p80 = scmp.ne.s32.totalorder %s68, %s69
    %p81 = scmp.eq.s32.totalorder %s17, 1
    %p82 = por %p80, %p81
    %p84 = scmp.ne.s32.totalorder %s69, %s83
    %p85 = scmp.eq.s32.totalorder %s17, 0
    %p86 = por %p84, %p85
    %s87 = ssub.s32 %s11, %s18
    %p88 = scmp.eq.s32.totalorder %s87, 0
    %s90 = sadd.s32 %s89, 1
    %s91 = scalar_select %p88, %s89, %s90
    %p94 = pneg %p88
    %p95 = scmp.eq.s32.totalorder %s11, 1
    %p96 = por %p94, %p95
    %p97 = scmp.ne.s32.totalorder %s89, %s92
    %p98 = scmp.eq.s32.totalorder %s11, 0
    %p99 = por %p97, %p98
    %p100 = scmp.ne.s32.totalorder %s89, %s92
    %p101 = scmp.eq.s32.totalorder %s16, 1
    %p102 = por %p100, %p101
    %p103 = scmp.ne.s32.totalorder %s92, %s93
    %p104 = scmp.eq.s32.totalorder %s16, 0
    %p105 = por %p103, %p104
    %p106 = scmp.ne.s32.totalorder %s92, %s93
    %p107 = scmp.eq.s32.totalorder %s17, 1
    %p108 = por %p106, %p107
    %p110 = scmp.ne.s32.totalorder %s93, %s109
    %p111 = scmp.eq.s32.totalorder %s17, 0
    %p112 = por %p110, %p111
    %s113 = ssub.s32 %s11, %s18
    %p114 = scmp.eq.s32.totalorder %s113, 0
    %s116 = sadd.s32 %s115, 1
    %s117 = scalar_select %p114, %s115, %s116
    %p120 = pneg %p114
    %p121 = scmp.eq.s32.totalorder %s11, 1
    %p122 = por %p120, %p121
    %p123 = scmp.ne.s32.totalorder %s115, %s118
    %p124 = scmp.eq.s32.totalorder %s11, 0
    %p125 = por %p123, %p124
    %p126 = scmp.ne.s32.totalorder %s115, %s118
    %p127 = scmp.eq.s32.totalorder %s16, 1
    %p128 = por %p126, %p127
    %p129 = scmp.ne.s32.totalorder %s118, %s119
    %p130 = scmp.eq.s32.totalorder %s16, 0
    %p131 = por %p129, %p130
    %p132 = scmp.ne.s32.totalorder %s118, %s119
    %p133 = scmp.eq.s32.totalorder %s17, 1
    %p134 = por %p132, %p133
    %p136 = scmp.ne.s32.totalorder %s119, %s135
    %p137 = scmp.eq.s32.totalorder %s17, 0
    %p138 = por %p136, %p137
    %p139 = scmp.le.s32.totalorder 1, %s11
    %p140 = scmp.lt.s32.totalorder %s11, 3
    %p141 = pnand %p139, %p140
    %p142 = pneg %p141
    // Predicated region
    $region9: #{upsample_forward.1} parent=5 // pred_check
      _
    $region10: #{upsample_forward.1} parent=5 // pred_check_branch
      %144 = sbr.rel (%p141) target = $region12
    $region11: #{upsample_forward.1} parent=5 // pred_region
      %s145 = ssub.s32 %s11, 1
      // Predicated region
      $region13: #{upsample_forward.1} parent=11 // pred_check
        %p146 = pneg %p58
      $region14: #{upsample_forward.1} parent=11 // pred_check_branch
        %148 = sbr.rel (%p146) target = $region16
      $region15: #{upsample_forward.1} parent=11 // pred_region
        _
      $region16: #{upsample_forward.1} parent=11 // pred_fallthru
        _
      // Predicated region
      $region17: #{upsample_forward.1} parent=11 // pred_check
        %p149 = pneg %p79
      $region18: #{upsample_forward.1} parent=11 // pred_check_branch
        %151 = sbr.rel (%p149) target = $region20
      $region19: #{upsample_forward.1} parent=11 // pred_region
        _
      $region20: #{upsample_forward.1} parent=11 // pred_fallthru
        _
    $region12: #{upsample_forward.1} parent=5 // pred_fallthru
      _
    %p152 = scmp.lt.s32.totalorder %s11, 2
    // Predicated region
    $region21: #{upsample_forward.1} parent=5 // pred_check
      %p153 = pneg %p152
    $region22: #{upsample_forward.1} parent=5 // pred_check_branch
      %155 = sbr.rel (%p153) target = $region24
    $region23: #{upsample_forward.1} parent=5 // pred_region
      // Predicated region
      $region25: #{upsample_forward.1} parent=23 // pred_check
        %p156 = pneg %p31
      $region26: #{upsample_forward.1} parent=23 // pred_check_branch
        %158 = sbr.rel (%p156) target = $region28
      $region27: #{upsample_forward.1} parent=23 // pred_region
        %p159 = scmp.lt.s32.totalorder %s11, 1
        %s160 = scalar_select %p159, %s11, 1
        %s161 = smul.addr %s160, 4
        %s162 = scalar_lea.vmem %s0, %s161
      $region28: #{upsample_forward.1} parent=23 // pred_fallthru
        _
    $region24: #{upsample_forward.1} parent=5 // pred_fallthru
      _
    %p163 = scmp.le.s32.totalorder 1, %s11
    %p164 = scmp.lt.s32.totalorder %s11, 3
    %p165 = pnand %p163, %p164
    %p166 = pneg %p165
    // Predicated region
    $region29: #{upsample_forward.1} parent=5 // pred_check
      _
    $region30: #{upsample_forward.1} parent=5 // pred_check_branch
      %168 = sbr.rel (%p165) target = $region32
    $region31: #{upsample_forward.1} parent=5 // pred_region
      %s169 = ssub.s32 %s11, 1
      %p170 = scmp.lt.s32.totalorder %s16, 1
      %s171 = scalar_select %p170, %s16, 1
      %s172 = smul.addr %s171, 4
      %s173 = scalar_lea.vmem %s0, %s172
      %p174 = pneg %p37
      %p175 = pneg %p34
      %p176 = pneg %p58
      %p177 = pneg %p55
      %p178 = pneg %p79
      %p179 = pneg %p76
      %p180 = pneg %p105
      %p181 = pneg %p102
      %p182 = scmp.lt.s32.totalorder %s16, 1
      %s183 = scalar_select %p182, %s16, 1
      %s184 = smul.addr %s183, 8
      %s185 = scalar_lea.vmem %s3, %s184
      %p186 = pneg %p131
      %p187 = pneg %p128
      %p188 = scmp.lt.s32.totalorder %s16, 1
      %s189 = scalar_select %p188, %s16, 1
      %s190 = smul.addr %s189, 8
      %s191 = scalar_lea.vmem %s4, %s190
      %p192 = scmp.lt.s32.totalorder %s16, 1
      %s193 = scalar_select %p192, %s16, 1
      %s194 = smul.addr %s193, 4
      %s195 = scalar_lea.vmem %s0, %s194
      %p196 = scmp.lt.s32.totalorder %s16, 1
      %s197 = scalar_select %p196, %s16, 1
      %s198 = smul.addr %s197, 8
      %s199 = scalar_lea.vmem %s3, %s198
      %p200 = scmp.lt.s32.totalorder %s16, 1
      %s201 = scalar_select %p200, %s16, 1
      %s202 = smul.addr %s201, 8
      %s203 = scalar_lea.vmem %s4, %s202
      %v204 = vld [vmem:[%s195] sm:$0xf]
      %205 = vrot.lane.b32.xlu0 %v204, 1
      %v206 = vpop.permute.xlu0 %205
      %207 = vrot.lane.b32.xlu0 %v204, 127
      %v208 = vpop.permute.xlu0 %207
      %v209 = vld [vmem:[%s2] sm:$0xff]
      %s210 = scalar_lea.vmem %s1, 8
      %v211 = vld [vmem:[%s210] sm:$0xff]
      %v212 = vld [vmem:[%s1] sm:$0xff]
      %vm213 = vcmask 31744
      %v215 = vsel %vm213, %v212, 0
      %vm217 = vcmask 1043456
      %v219 = vsel %vm217, %v206, 0
      %221 = vmatprep.subr.mxu0 0.0
      %222 = vmatpush1.msra.mxu0 %v219
      %223 = vmatprep.subr.mxu0 0.0
      %224 = vmatpush1.msra.mxu0 0.0
      %225 = vmatprep.subr.mxu0 0.0
      %226 = vmatpush1.msra.mxu0 0.0
      %227 = vmatprep.subr.mxu0 0.0
      %228 = vmatpush1.msra.mxu0 0.0
      %229 = vmatprep.subr.mxu0 0.0
      %230 = vmatpush1.msra.mxu0 0.0
      %231 = vmatprep.subr.mxu0 0.0
      %232 = vmatpush1.msra.mxu0 0.0
      %233 = vmatprep.subr.mxu0 0.0
      %234 = vmatpush1.msra.mxu0 0.0
      %235 = vmatprep.subr.mxu0 0.0
      %236 = vmatpush1.msra.mxu0 0.0
      %237 = vmatprep.subr.mxu0 0.0
      %238 = vmatpush1.msra.mxu0 0.0
      %239 = vmatprep.subr.mxu0 0.0
      %240 = vmatpush1.msra.mxu0 0.0
      %241 = vmatprep.subr.mxu0 0.0
      %242 = vmatpush1.msra.mxu0 0.0
      %243 = vmatprep.subr.mxu0 0.0
      %244 = vmatpush1.msra.mxu0 0.0
      %245 = vmatprep.subr.mxu0 0.0
      %246 = vmatpush1.msra.mxu0 0.0
      %247 = vmatprep.subr.mxu0 0.0
      %248 = vmatpush1.msra.mxu0 0.0
      %249 = vmatprep.subr.mxu0 0.0
      %250 = vmatpush1.msra.mxu0 0.0
      %251 = vmatprep.subr.mxu0 0.0
      %252 = vmatpush1.msra.mxu0 0.0
      %253 = vmatprep.subr.mxu0 0.0
      %254 = vmatpush1.msra.mxu0 0.0
      %255 = vmatprep.subr.mxu0 0.0
      %256 = vmatpush1.msra.mxu0 0.0
      %257 = vmatprep.subr.mxu0 0.0
      %258 = vmatpush1.msra.mxu0 0.0
      %259 = vmatprep.subr.mxu0 0.0
      %260 = vmatpush1.msra.mxu0 0.0
      %261 = vmatprep.subr.mxu0 0.0
      %262 = vmatpush1.msra.mxu0 0.0
      %263 = vmatprep.subr.mxu0 0.0
      %264 = vmatpush1.msra.mxu0 0.0
      %265 = vmatprep.subr.mxu0 0.0
      %266 = vmatpush1.msra.mxu0 0.0
      %267 = vmatprep.subr.mxu0 0.0
      %268 = vmatpush1.msra.mxu0 0.0
      %269 = vmatprep.subr.mxu0 0.0
      %270 = vmatpush1.msra.mxu0 0.0
      %271 = vmatprep.subr.mxu0 0.0
      %272 = vmatpush1.msra.mxu0 0.0
      %273 = vmatprep.subr.mxu0 0.0
      %274 = vmatpush1.msra.mxu0 0.0
      %275 = vmatprep.subr.mxu0 0.0
      %276 = vmatpush1.msra.mxu0 0.0
      %277 = vmatprep.subr.mxu0 0.0
      %278 = vmatpush1.msra.mxu0 0.0
      %279 = vmatprep.subr.mxu0 0.0
      %280 = vmatpush1.msra.mxu0 0.0
      %281 = vmatprep.subr.mxu0 0.0
      %282 = vmatpush1.msra.mxu0 0.0
      %283 = vmatprep.subr.mxu0 0.0
      %284 = vmatpush1.msra.mxu0 0.0
      %285 = vmatprep.mubr.f32.mxu0 0.0
      %286 = vmatmul.mubr.f32.gmra.mrb[0].mxu0 %v215
      %v287 = vpop.f32.mrb[0].mxu0
      %v288 = vadd.f32 0.0, %v287
      %v289 = vpop.f32.mrb[0].mxu0
      %290 = vdwg.mxu0
      %v292 = vsel %vm213, %v211, 0
      %v295 = vsel %vm217, %v204, 0
      %297 = vmatprep.subr.mxu0 0.0
      %298 = vmatpush1.msra.mxu0 %v295
      %299 = vmatprep.subr.mxu0 0.0
      %300 = vmatpush1.msra.mxu0 0.0
      %301 = vmatprep.subr.mxu0 0.0
      %302 = vmatpush1.msra.mxu0 0.0
      %303 = vmatprep.subr.mxu0 0.0
      %304 = vmatpush1.msra.mxu0 0.0
      %305 = vmatprep.subr.mxu0 0.0
      %306 = vmatpush1.msra.mxu0 0.0
      %307 = vmatprep.subr.mxu0 0.0
      %308 = vmatpush1.msra.mxu0 0.0
      %309 = vmatprep.subr.mxu0 0.0
      %310 = vmatpush1.msra.mxu0 0.0
      %311 = vmatprep.subr.mxu0 0.0
      %312 = vmatpush1.msra.mxu0 0.0
      %313 = vmatprep.subr.mxu0 0.0
      %314 = vmatpush1.msra.mxu0 0.0
      %315 = vmatprep.subr.mxu0 0.0
      %316 = vmatpush1.msra.mxu0 0.0
      %317 = vmatprep.subr.mxu0 0.0
      %318 = vmatpush1.msra.mxu0 0.0
      %319 = vmatprep.subr.mxu0 0.0
      %320 = vmatpush1.msra.mxu0 0.0
      %321 = vmatprep.subr.mxu0 0.0
      %322 = vmatpush1.msra.mxu0 0.0
      %323 = vmatprep.subr.mxu0 0.0
      %324 = vmatpush1.msra.mxu0 0.0
      %325 = vmatprep.subr.mxu0 0.0
      %326 = vmatpush1.msra.mxu0 0.0
      %327 = vmatprep.subr.mxu0 0.0
      %328 = vmatpush1.msra.mxu0 0.0
      %329 = vmatprep.subr.mxu0 0.0
      %330 = vmatpush1.msra.mxu0 0.0
      %331 = vmatprep.subr.mxu0 0.0
      %332 = vmatpush1.msra.mxu0 0.0
      %333 = vmatprep.subr.mxu0 0.0
      %334 = vmatpush1.msra.mxu0 0.0
      %335 = vmatprep.subr.mxu0 0.0
      %336 = vmatpush1.msra.mxu0 0.0
      %337 = vmatprep.subr.mxu0 0.0
      %338 = vmatpush1.msra.mxu0 0.0
      %339 = vmatprep.subr.mxu0 0.0
      %340 = vmatpush1.msra.mxu0 0.0
      %341 = vmatprep.subr.mxu0 0.0
      %342 = vmatpush1.msra.mxu0 0.0
      %343 = vmatprep.subr.mxu0 0.0
      %344 = vmatpush1.msra.mxu0 0.0
      %345 = vmatprep.subr.mxu0 0.0
      %346 = vmatpush1.msra.mxu0 0.0
      %347 = vmatprep.subr.mxu0 0.0
      %348 = vmatpush1.msra.mxu0 0.0
      %349 = vmatprep.subr.mxu0 0.0
      %350 = vmatpush1.msra.mxu0 0.0
      %351 = vmatprep.subr.mxu0 0.0
      %352 = vmatpush1.msra.mxu0 0.0
      %353 = vmatprep.subr.mxu0 0.0
      %354 = vmatpush1.msra.mxu0 0.0
      %355 = vmatprep.subr.mxu0 0.0
      %356 = vmatpush1.msra.mxu0 0.0
      %357 = vmatprep.subr.mxu0 0.0
      %358 = vmatpush1.msra.mxu0 0.0
      %359 = vmatprep.subr.mxu0 0.0
      %360 = vmatpush1.msra.mxu0 0.0
      %361 = vmatprep.mubr.f32.mxu0 0.0
      %362 = vmatmul.mubr.f32.gmra.mrb[0].mxu0 %v292
      %v363 = vpop.f32.mrb[0].mxu0
      %v364 = vadd.f32 %v288, %v363
      %v365 = vpop.f32.mrb[0].mxu0
      %366 = vdwg.mxu0
      %s367 = scalar_lea.vmem %s1, 16
      %v368 = vld [vmem:[%s367] sm:$0xff]
      %s369 = scalar_lea.vmem %s1, 24
      %v370 = vld [vmem:[%s369] sm:$0xff]
      %v372 = vsel %vm213, %v370, 0
      %v375 = vsel %vm217, %v208, 0
      %377 = vmatprep.subr.mxu0 0.0
      %378 = vmatpush1.msra.mxu0 %v375
      %379 = vmatprep.subr.mxu0 0.0
      %380 = vmatpush1.msra.mxu0 0.0
      %381 = vmatprep.subr.mxu0 0.0
      %382 = vmatpush1.msra.mxu0 0.0
      %383 = vmatprep.subr.mxu0 0.0
      %384 = vmatpush1.msra.mxu0 0.0
      %385 = vmatprep.subr.mxu0 0.0
      %386 = vmatpush1.msra.mxu0 0.0
      %387 = vmatprep.subr.mxu0 0.0
      %388 = vmatpush1.msra.mxu0 0.0
      %389 = vmatprep.subr.mxu0 0.0
      %390 = vmatpush1.msra.mxu0 0.0
      %391 = vmatprep.subr.mxu0 0.0
      %392 = vmatpush1.msra.mxu0 0.0
      %393 = vmatprep.subr.mxu0 0.0
      %394 = vmatpush1.msra.mxu0 0.0
      %395 = vmatprep.subr.mxu0 0.0
      %396 = vmatpush1.msra.mxu0 0.0
      %397 = vmatprep.subr.mxu0 0.0
      %398 = vmatpush1.msra.mxu0 0.0
      %399 = vmatprep.subr.mxu0 0.0
      %400 = vmatpush1.msra.mxu0 0.0
      %401 = vmatprep.subr.mxu0 0.0
      %402 = vmatpush1.msra.mxu0 0.0
      %403 = vmatprep.subr.mxu0 0.0
      %404 = vmatpush1.msra.mxu0 0.0
      %405 = vmatprep.subr.mxu0 0.0
      %406 = vmatpush1.msra.mxu0 0.0
      %407 = vmatprep.subr.mxu0 0.0
      %408 = vmatpush1.msra.mxu0 0.0
      %409 = vmatprep.subr.mxu0 0.0
      %410 = vmatpush1.msra.mxu0 0.0
      %411 = vmatprep.subr.mxu0 0.0
      %412 = vmatpush1.msra.mxu0 0.0
      %413 = vmatprep.subr.mxu0 0.0
      %414 = vmatpush1.msra.mxu0 0.0
      %415 = vmatprep.subr.mxu0 0.0
      %416 = vmatpush1.msra.mxu0 0.0
      %417 = vmatprep.subr.mxu0 0.0
      %418 = vmatpush1.msra.mxu0 0.0
      %419 = vmatprep.subr.mxu0 0.0
      %420 = vmatpush1.msra.mxu0 0.0
      %421 = vmatprep.subr.mxu0 0.0
      %422 = vmatpush1.msra.mxu0 0.0
      %423 = vmatprep.subr.mxu0 0.0
      %424 = vmatpush1.msra.mxu0 0.0
      %425 = vmatprep.subr.mxu0 0.0
      %426 = vmatpush1.msra.mxu0 0.0
      %427 = vmatprep.subr.mxu0 0.0
      %428 = vmatpush1.msra.mxu0 0.0
      %429 = vmatprep.subr.mxu0 0.0
      %430 = vmatpush1.msra.mxu0 0.0
      %431 = vmatprep.subr.mxu0 0.0
      %432 = vmatpush1.msra.mxu0 0.0
      %433 = vmatprep.subr.mxu0 0.0
      %434 = vmatpush1.msra.mxu0 0.0
      %435 = vmatprep.subr.mxu0 0.0
      %436 = vmatpush1.msra.mxu0 0.0
      %437 = vmatprep.subr.mxu0 0.0
      %438 = vmatpush1.msra.mxu0 0.0
      %439 = vmatprep.subr.mxu0 0.0
      %440 = vmatpush1.msra.mxu0 0.0
      %441 = vmatprep.mubr.f32.mxu0 0.0
      %442 = vmatmul.mubr.f32.gmra.mrb[0].mxu0 %v372
      %v443 = vpop.f32.mrb[0].mxu0
      %v444 = vadd.f32 0.0, %v443
      %v445 = vpop.f32.mrb[0].mxu0
      %446 = vdwg.mxu0
      %v448 = vsel %vm213, %v368, 0
      %450 = vmatprep.subr.mxu0 0.0
      %451 = vmatpush1.msra.mxu0 %v295
      %452 = vmatprep.subr.mxu0 0.0
      %453 = vmatpush1.msra.mxu0 0.0
      %454 = vmatprep.subr.mxu0 0.0
      %455 = vmatpush1.msra.mxu0 0.0
      %456 = vmatprep.subr.mxu0 0.0
      %457 = vmatpush1.msra.mxu0 0.0
      %458 = vmatprep.subr.mxu0 0.0
      %459 = vmatpush1.msra.mxu0 0.0
      %460 = vmatprep.subr.mxu0 0.0
      %461 = vmatpush1.msra.mxu0 0.0
      %462 = vmatprep.subr.mxu0 0.0
      %463 = vmatpush1.msra.mxu0 0.0
      %464 = vmatprep.subr.mxu0 0.0
      %465 = vmatpush1.msra.mxu0 0.0
      %466 = vmatprep.subr.mxu0 0.0
      %467 = vmatpush1.msra.mxu0 0.0
      %468 = vmatprep.subr.mxu0 0.0
      %469 = vmatpush1.msra.mxu0 0.0
      %470 = vmatprep.subr.mxu0 0.0
      %471 = vmatpush1.msra.mxu0 0.0
      %472 = vmatprep.subr.mxu0 0.0
      %473 = vmatpush1.msra.mxu0 0.0
      %474 = vmatprep.subr.mxu0 0.0
      %475 = vmatpush1.msra.mxu0 0.0
      %476 = vmatprep.subr.mxu0 0.0
      %477 = vmatpush1.msra.mxu0 0.0
      %478 = vmatprep.subr.mxu0 0.0
      %479 = vmatpush1.msra.mxu0 0.0
      %480 = vmatprep.subr.mxu0 0.0
      %481 = vmatpush1.msra.mxu0 0.0
      %482 = vmatprep.subr.mxu0 0.0
      %483 = vmatpush1.msra.mxu0 0.0
      %484 = vmatprep.subr.mxu0 0.0
      %485 = vmatpush1.msra.mxu0 0.0
      %486 = vmatprep.subr.mxu0 0.0
      %487 = vmatpush1.msra.mxu0 0.0
      %488 = vmatprep.subr.mxu0 0.0
      %489 = vmatpush1.msra.mxu0 0.0
      %490 = vmatprep.subr.mxu0 0.0
      %491 = vmatpush1.msra.mxu0 0.0
      %492 = vmatprep.subr.mxu0 0.0
      %493 = vmatpush1.msra.mxu0 0.0
      %494 = vmatprep.subr.mxu0 0.0
      %495 = vmatpush1.msra.mxu0 0.0
      %496 = vmatprep.subr.mxu0 0.0
      %497 = vmatpush1.msra.mxu0 0.0
      %498 = vmatprep.subr.mxu0 0.0
      %499 = vmatpush1.msra.mxu0 0.0
      %500 = vmatprep.subr.mxu0 0.0
      %501 = vmatpush1.msra.mxu0 0.0
      %502 = vmatprep.subr.mxu0 0.0
      %503 = vmatpush1.msra.mxu0 0.0
      %504 = vmatprep.subr.mxu0 0.0
      %505 = vmatpush1.msra.mxu0 0.0
      %506 = vmatprep.subr.mxu0 0.0
      %507 = vmatpush1.msra.mxu0 0.0
      %508 = vmatprep.subr.mxu0 0.0
      %509 = vmatpush1.msra.mxu0 0.0
      %510 = vmatprep.subr.mxu0 0.0
      %511 = vmatpush1.msra.mxu0 0.0
      %512 = vmatprep.subr.mxu0 0.0
      %513 = vmatpush1.msra.mxu0 0.0
      %514 = vmatprep.mubr.f32.mxu0 0.0
      %515 = vmatmul.mubr.f32.gmra.mrb[0].mxu0 %v448
      %v516 = vpop.f32.mrb[0].mxu0
      %v517 = vadd.f32 %v444, %v516
      %v518 = vpop.f32.mrb[0].mxu0
      %519 = vdwg.mxu0
      %521 = vset.pattern.permute.xlu0 0
      %522 = vperm.xlu0 %521, %v209
      %v523 = vpop.permute.xlu0 %522
      %v525 = vadd.f32 %v364, %v523
      %526 = vst [vmem:[%s199] sm:$0xff] %v525
      %v527 = vadd.f32 %v517, %v523
      %528 = vst [vmem:[%s203] sm:$0xff] %v527
      %p529 = scmp.lt.s32.totalorder %s16, 1
      %s530 = scalar_select %p529, %s16, 1
      %s531 = smul.addr %s530, 8
      %s532 = scalar_lea.vmem %s3, %s531
      %p533 = scmp.lt.s32.totalorder %s16, 1
      %s534 = scalar_select %p533, %s16, 1
      %s535 = smul.addr %s534, 8
      %s536 = scalar_lea.vmem %s4, %s535
      // Predicated region
      $region33: #{upsample_forward.1} parent=31 // pred_check
        %p537 = pneg %p102
      $region34: #{upsample_forward.1} parent=31 // pred_check_branch
        %539 = sbr.rel (%p537) target = $region36
      $region35: #{upsample_forward.1} parent=31 // pred_region
        _
      $region36: #{upsample_forward.1} parent=31 // pred_fallthru
        _
      // Predicated region
      $region37: #{upsample_forward.1} parent=31 // pred_check
        %p540 = pneg %p128
      $region38: #{upsample_forward.1} parent=31 // pred_check_branch
        %542 = sbr.rel (%p540) target = $region40
      $region39: #{upsample_forward.1} parent=31 // pred_region
        _
      $region40: #{upsample_forward.1} parent=31 // pred_fallthru
        _
    $region32: #{upsample_forward.1} parent=5 // pred_fallthru
      _
    %p543 = scmp.le.s32.totalorder 2, %s11
    // Predicated region
    $region41: #{upsample_forward.1} parent=5 // pred_check
      %p544 = pneg %p543
    $region42: #{upsample_forward.1} parent=5 // pred_check_branch
      %546 = sbr.rel (%p544) target = $region44
    $region43: #{upsample_forward.1} parent=5 // pred_region
      %s547 = ssub.s32 %s11, 2
      // Predicated region
      $region45: #{upsample_forward.1} parent=43 // pred_check
        %p548 = pneg %p108
      $region46: #{upsample_forward.1} parent=43 // pred_check_branch
        %550 = sbr.rel (%p548) target = $region48
      $region47: #{upsample_forward.1} parent=43 // pred_region
        %p551 = scmp.lt.s32.totalorder %s17, 1
        %s552 = scalar_select %p551, %s17, 1
        %s553 = smul.addr %s552, 8
        %s554 = scalar_lea.vmem %s3, %s553
      $region48: #{upsample_forward.1} parent=43 // pred_fallthru
        _
      // Predicated region
      $region49: #{upsample_forward.1} parent=43 // pred_check
        %p555 = pneg %p134
      $region50: #{upsample_forward.1} parent=43 // pred_check_branch
        %557 = sbr.rel (%p555) target = $region52
      $region51: #{upsample_forward.1} parent=43 // pred_region
        %p558 = scmp.lt.s32.totalorder %s17, 1
        %s559 = scalar_select %p558, %s17, 1
        %s560 = smul.addr %s559, 8
        %s561 = scalar_lea.vmem %s4, %s560
      $region52: #{upsample_forward.1} parent=43 // pred_fallthru
        _
    $region44: #{upsample_forward.1} parent=5 // pred_fallthru
      _
  $region6: #{upsample_forward.1} parent=0 // loop_footer
    %s15 = sadd.s32 1, %s11
  $region7: #{upsample_forward.1} parent=0 // loop_footer_branch
    %10 = sbr.rel target = $region3
  $region8: #{upsample_forward.1} parent=0 // loop_exit
    _

</llo_original>
